<compile_context>
chip_gen: v7x
topology: tpu7x:2x2x1
jax: 0.10.0
libtpu: 0.0.40
codegen_flags: <defaults>
</compile_context>

<pallas_src>
import numpy as np
import jax
import jax.numpy as jnp
from jax.experimental import pallas as pl
from jax.experimental.pallas import tpu as pltpu

LANE = 128
VMEM_LIMIT_BYTES = 48 * 1024 * 1024       # scoped VMEM request (safe on v7x 64 MiB)
TILE_BUDGET_BYTES = 32 * 1024 * 1024      # working-set budget used to size tm
RESIDENT_WEIGHT_BYTES = 8 * 1024 * 1024   # keep full weight in VMEM up to this


def _round_up(a, b):
    return ((a + b - 1) // b) * b


def _pad_axis(arr, axis, target):
    cur = arr.shape[axis]
    if cur == target:
        return arr
    pads = [(0, 0)] * arr.ndim
    pads[axis] = (0, target - cur)
    return jnp.pad(arr, pads)


def _pick_tile(dim_p, candidates=(512, 256, 128)):
    for c in candidates:
        if dim_p % c == 0:
            return c
    return 128  # dim_p is always a multiple of 128 on this path


def _choose_tm(M, cap):
    """Row-tile for the resident path.  Prefers not padding M at all."""
    cap = max(8, min(int(cap), 1024))
    if M <= cap:
        return M, M                           # full-M block: always layout-legal
    floor8 = cap - cap % 8
    for t in range(floor8, 127, -8):          # largest mult-of-8 divisor of M
        if M % t == 0:
            return t, M
    t = min(floor8, 256)
    return t, _round_up(M, t)                 # last resort: pad M


# -----------------------------------------------------------------------------
# Kernels
# -----------------------------------------------------------------------------
def _resident_kernel(use_pre):
    """Single-shot kernel: whole K and N resident, grid = (B, M/tm)."""
    if use_pre:
        def kernel(x_ref, alpha_ref, pre_ref, post_ref, w_ref, o_ref):
            w = w_ref[...]                                            # (K, N)
            xm = ((x_ref[...] + pre_ref[...]) * alpha_ref[...]).astype(w.dtype)
            acc = jnp.dot(xm, w, preferred_element_type=jnp.float32)
            o_ref[...] = (acc + post_ref[...]).astype(o_ref.dtype)
    else:
        def kernel(x_ref, alpha_ref, post_ref, w_ref, o_ref):
            w = w_ref[...]
            xm = (x_ref[...] * alpha_ref[...]).astype(w.dtype)
            acc = jnp.dot(xm, w, preferred_element_type=jnp.float32)
            o_ref[...] = (acc + post_ref[...]).astype(o_ref.dtype)
    return kernel


def _tiled_kernel(use_pre):
    """Fallback for huge weights: grid = (B, M/tm, N/tn, K/tk), K innermost."""
    if use_pre:
        def kernel(x_ref, alpha_ref, pre_ref, post_ref, w_ref, o_ref, acc_ref):
            k = pl.program_id(3)

            @pl.when(k == 0)
            def _():
                acc_ref[...] = jnp.zeros_like(acc_ref)

            w = w_ref[...]                                            # (tk, tn)
            xm = ((x_ref[...] + pre_ref[...]) * alpha_ref[...]).astype(w.dtype)
            acc_ref[...] += jnp.dot(xm, w, preferred_element_type=jnp.float32)

            @pl.when(k == pl.num_programs(3) - 1)
            def _():
                o_ref[...] = (acc_ref[...] + post_ref[...]).astype(o_ref.dtype)
    else:
        def kernel(x_ref, alpha_ref, post_ref, w_ref, o_ref, acc_ref):
            k = pl.program_id(3)

            @pl.when(k == 0)
            def _():
                acc_ref[...] = jnp.zeros_like(acc_ref)

            w = w_ref[...]
            xm = (x_ref[...] * alpha_ref[...]).astype(w.dtype)
            acc_ref[...] += jnp.dot(xm, w, preferred_element_type=jnp.float32)

            @pl.when(k == pl.num_programs(3) - 1)
            def _():
                o_ref[...] = (acc_ref[...] + post_ref[...]).astype(o_ref.dtype)
    return kernel


# -----------------------------------------------------------------------------
# Wrapper
# -----------------------------------------------------------------------------
def mod_linear_forward(x, z, params, *, has_bias=True, mod_bias=True,
                       output_mode=False, mxu_dtype=None, force_tiled=False):
    """Pallas-backed forward pass matching ModLinear.forward."""
    x_shape = x.shape
    B = x_shape[0]
    K = x_shape[-1]                      # in_features
    x3 = x.reshape(B, -1, K)             # (B, M, K)
    M = x3.shape[1]
    z2 = z.reshape(B, z.shape[-1])       # (B, style)

    N = params["weight"].shape[0]        # out_features
    dtype = x.dtype
    w_dtype = jnp.dtype(mxu_dtype) if mxu_dtype is not None else jnp.dtype(dtype)

    # --- tiny per-batch style projections (XLA glue, O(B*style*K) only) ---
    alpha = (z2 @ params["weight_alpha"].T + params["bias_alpha"]).astype(dtype)  # (B, K)
    post = jnp.zeros((B, N), jnp.float32)                                         # f32 bias path
    if has_bias:
        post = post + params["bias"].astype(jnp.float32)[None, :]
    use_pre = bool(mod_bias and not output_mode)
    pre = None
    if mod_bias:
        beta = z2 @ params["weight_beta"].T + params["bias_beta"]                 # (B, K or N)
        if output_mode:
            post = post + beta.astype(jnp.float32)
        else:
            pre = beta.astype(dtype)

    wT = params["weight"].T.astype(w_dtype)   # (K, N) pre-transposed: kernel does xm @ w

    x_items = jnp.dtype(dtype).itemsize
    w_items = jnp.dtype(w_dtype).itemsize
    w_bytes = K * N * w_items

    cost = pl.CostEstimate(
        flops=2 * B * M * N * K,
        transcendentals=0,
        bytes_accessed=B * M * K * x_items + K * N * w_items + B * M * N * x_items)

    # Per-row working set on the resident path: double-buffered x/out tiles
    # plus f32 temporaries (modulated operand + accumulator).
    row_bytes = x_items * 2 * (K + N) + 4 * (K + N)
    tm_cap = (TILE_BUDGET_BYTES - 2 * w_bytes) // row_bytes
    resident = (not force_tiled) and (w_bytes <= RESIDENT_WEIGHT_BYTES) and tm_cap >= 8

    if resident:
        # ---------------- resident-weight fast path (no K/N padding) --------
        tm, Mp = _choose_tm(M, min(512, tm_cap))
        x_p = _pad_axis(x3, 1, Mp)                                  # (B, Mp, K)

        in_specs = [
            pl.BlockSpec((None, tm, K), lambda b, i: (b, i, 0)),    # x tile
            pl.BlockSpec((None, 1, K),  lambda b, i: (b, 0, 0)),    # alpha: once per batch
        ]
        args = [x_p, alpha.reshape(B, 1, K)]
        if use_pre:
            in_specs.append(pl.BlockSpec((None, 1, K), lambda b, i: (b, 0, 0)))  # pre (beta)
            args.append(pre.reshape(B, 1, K))
        in_specs.append(pl.BlockSpec((None, 1, N), lambda b, i: (b, 0, 0)))      # post (f32)
        args.append(post.reshape(B, 1, N))
        in_specs.append(pl.BlockSpec((K, N), lambda b, i: (0, 0)))               # weight, resident
        args.append(wT)

        out_p = pl.pallas_call(
            _resident_kernel(use_pre),
            out_shape=jax.ShapeDtypeStruct((B, Mp, N), dtype),
            grid_spec=pltpu.PrefetchScalarGridSpec(
                num_scalar_prefetch=0,
                grid=(B, Mp // tm),
                in_specs=in_specs,
                out_specs=pl.BlockSpec((None, tm, N), lambda b, i: (b, i, 0)),
            ),
            compiler_params=pltpu.CompilerParams(
                dimension_semantics=("parallel", "parallel"),
                vmem_limit_bytes=VMEM_LIMIT_BYTES),
            cost_estimate=cost,
        )(*args)
        out3 = out_p if Mp == M else out_p[:, :M, :]
    else:
        # ---------------- tiled fallback (huge weight) -----------------------
        Kp = _round_up(K, LANE)
        Np = _round_up(N, LANE)
        tm = 512 if M > 512 else _round_up(M, 8)
        Mp = _round_up(M, tm)
        tk = _pick_tile(Kp)
        tn = _pick_tile(Np)

        # zero-padded K rows of wT -> padded x lanes contribute nothing
        x_p = _pad_axis(_pad_axis(x3, 2, Kp), 1, Mp)              # (B, Mp, Kp)
        alpha_p = _pad_axis(alpha, 1, Kp).reshape(B, 1, Kp)
        post_p = _pad_axis(post, 1, Np).reshape(B, 1, Np)
        w_p = _pad_axis(_pad_axis(wT, 0, Kp), 1, Np)              # (Kp, Np)

        in_specs = [
            pl.BlockSpec((None, tm, tk), lambda b, i, j, k: (b, i, k)),   # x
            pl.BlockSpec((None, 1, tk),  lambda b, i, j, k: (b, 0, k)),   # alpha
        ]
        args = [x_p, alpha_p]
        if use_pre:
            in_specs.append(pl.BlockSpec((None, 1, tk), lambda b, i, j, k: (b, 0, k)))  # pre
            args.append(_pad_axis(pre, 1, Kp).reshape(B, 1, Kp))
        in_specs.append(pl.BlockSpec((None, 1, tn), lambda b, i, j, k: (b, 0, j)))      # post
        args.append(post_p)
        in_specs.append(pl.BlockSpec((tk, tn), lambda b, i, j, k: (k, j)))              # weight
        args.append(w_p)

        out_p = pl.pallas_call(
            _tiled_kernel(use_pre),
            out_shape=jax.ShapeDtypeStruct((B, Mp, Np), dtype),
            grid_spec=pltpu.PrefetchScalarGridSpec(
                num_scalar_prefetch=0,
                grid=(B, Mp // tm, Np // tn, Kp // tk),
                in_specs=in_specs,
                out_specs=pl.BlockSpec((None, tm, tn), lambda b, i, j, k: (b, i, j)),
                scratch_shapes=[pltpu.VMEM((tm, tn), jnp.float32)],
            ),
            compiler_params=pltpu.CompilerParams(
                dimension_semantics=("parallel", "parallel", "parallel", "arbitrary"),
                vmem_limit_bytes=VMEM_LIMIT_BYTES),
            cost_estimate=cost,
        )(*args)
        out3 = out_p[:, :M, :N]

    return out3.reshape(*x_shape[:-1], N)


# -----------------------------------------------------------------------------
# Parameter init + pure-JAX reference
# -----------------------------------------------------------------------------
def init_params(key, in_features, out_features, style_features,
                weight_gain=1.0, bias_init=0.0):
    """Deterministic synthetic init mirroring ModLinear.__init__ (default flags)."""
    k_w, k_wa, k_wb = jax.random.split(key, 3)
    wg = weight_gain / np.sqrt(in_features)
    return {
        "weight": jax.random.normal(k_w, (out_features, in_features), jnp.float32) * wg,
        "bias": jnp.full((out_features,), np.float32(bias_init)),
        "weight_alpha": jax.random.normal(k_wa, (in_features, style_features),
                                          jnp.float32) / np.sqrt(style_features),
        "bias_alpha": jnp.ones((in_features,), jnp.float32),
        "weight_beta": jax.random.normal(k_wb, (in_features, style_features),
                                         jnp.float32) / np.sqrt(style_features),
        "bias_beta": jnp.zeros((in_features,), jnp.float32),
    }


def ref_forward(x, z, p):
    """Pure-JAX reference reproducing the PyTorch forward (default flags)."""
    B = x.shape[0]
    x3 = x.reshape(B, -1, x.shape[-1])
    z2 = z.reshape(B, z.shape[-1])
    alpha = z2 @ p["weight_alpha"].T + p["bias_alpha"]
    beta = z2 @ p["weight_beta"].T + p["bias_beta"]
    w = p["weight"][None, :, :] * alpha[:, None, :]
    x3 = x3 + beta[:, None, :]
    out = jnp.einsum("bmk,bnk->bmn", x3, w) + p["bias"][None, None, :]
    return out.reshape(*x.shape[:-1], out.shape[-1])


if __name__ == "__main__":
    key = jax.random.PRNGKey(0)
    k_p, k_x, k_z, k_p2, k_x2, k_z2 = jax.random.split(key, 6)

    # ---- default config, resident-weight fast path ----
    B, H, W = 2, 16, 16
    in_features, out_features, style_features = 64, 128, 32
    params = init_params(k_p, in_features, out_features, style_features)
    x = jax.random.normal(k_x, (B, H, W, in_features), jnp.float32)
    z = jax.random.normal(k_z, (B, style_features), jnp.float32)

    out = mod_linear_forward(x, z, params,
                             has_bias=True, mod_bias=True, output_mode=False)
    out = jax.block_until_ready(out)
    ref = ref_forward(x, z, params)
    assert out.shape == (B, H, W, out_features)
    np.testing.assert_allclose(np.asarray(out), np.asarray(ref),
                               rtol=1e-4, atol=1e-4)

    # ---- tiled fallback path (K accumulation across grid steps) ----
    B2, H2, W2 = 2, 8, 8
    in2, out2, st2 = 384, 256, 32
    params2 = init_params(k_p2, in2, out2, st2)
    x2 = jax.random.normal(k_x2, (B2, H2, W2, in2), jnp.float32)
    z2 = jax.random.normal(k_z2, (B2, st2), jnp.float32)

    o2 = mod_linear_forward(x2, z2, params2, force_tiled=True)
    o2 = jax.block_until_ready(o2)
    r2 = ref_forward(x2, z2, params2)
    assert o2.shape == (B2, H2, W2, out2)
    np.testing.assert_allclose(np.asarray(o2), np.asarray(r2),
                               rtol=1e-3, atol=1e-3)

    print("KERNEL_OK")
</pallas_src>

<mosaic_0001>
module attributes {stable_mosaic.version = 11 : i64} {
  func.func @kernel(%arg0: i32, %arg1: i32, %arg2: memref<1x256x64xf32, #tpu.memory_space<vmem>>, %arg3: memref<1x1x64xf32, #tpu.memory_space<vmem>>, %arg4: memref<1x1x64xf32, #tpu.memory_space<vmem>>, %arg5: memref<1x1x128xf32, #tpu.memory_space<vmem>>, %arg6: memref<64x128xf32, #tpu.memory_space<vmem>>, %arg7: memref<1x256x128xf32, #tpu.memory_space<vmem>>) attributes {dimension_semantics = [#tpu.dimension_semantics<parallel>, #tpu.dimension_semantics<parallel>], iteration_bounds = array<i64: 2, 1>, scalar_prefetch = 0 : i64, scratch_operands = 0 : i64, tpu.core_type = #tpu.core_type<tc>, window_params = [{transform_indices = @transform_0, window_bounds = array<i64: 1, 256, 64>}, {transform_indices = @transform_1, window_bounds = array<i64: 1, 1, 64>}, {transform_indices = @transform_2, window_bounds = array<i64: 1, 1, 64>}, {transform_indices = @transform_3, window_bounds = array<i64: 1, 1, 128>}, {pipeline_mode = #tpu.pipeline_mode<synchronous>, transform_indices = @transform_4, window_bounds = array<i64: 64, 128>}, {transform_indices = @transform_5, window_bounds = array<i64: 1, 256, 128>}]} {
    %c0 = arith.constant 0 : index
    %c0_0 = arith.constant 0 : index
    %0 = vector.load %arg6[%c0, %c0_0] : memref<64x128xf32, #tpu.memory_space<vmem>>, vector<64x128xf32>
    %c0_1 = arith.constant 0 : index
    %c0_2 = arith.constant 0 : index
    %c0_3 = arith.constant 0 : index
    %1 = vector.load %arg2[%c0_1, %c0_2, %c0_3] : memref<1x256x64xf32, #tpu.memory_space<vmem>>, vector<1x256x64xf32>
    %2 = vector.shape_cast %1 : vector<1x256x64xf32> to vector<256x64xf32>
    %c0_4 = arith.constant 0 : index
    %c0_5 = arith.constant 0 : index
    %c0_6 = arith.constant 0 : index
    %3 = vector.load %arg4[%c0_4, %c0_5, %c0_6] : memref<1x1x64xf32, #tpu.memory_space<vmem>>, vector<1x1x64xf32>
    %4 = vector.shape_cast %3 : vector<1x1x64xf32> to vector<1x64xf32>
    %5 = vector.broadcast %4 : vector<1x64xf32> to vector<256x64xf32>
    %6 = arith.addf %2, %5 : vector<256x64xf32>
    %c0_7 = arith.constant 0 : index
    %c0_8 = arith.constant 0 : index
    %c0_9 = arith.constant 0 : index
    %7 = vector.load %arg3[%c0_7, %c0_8, %c0_9] : memref<1x1x64xf32, #tpu.memory_space<vmem>>, vector<1x1x64xf32>
    %8 = vector.shape_cast %7 : vector<1x1x64xf32> to vector<1x64xf32>
    %9 = vector.broadcast %8 : vector<1x64xf32> to vector<256x64xf32>
    %10 = arith.mulf %6, %9 : vector<256x64xf32>
    %cst = arith.constant dense<0.000000e+00> : vector<256x128xf32>
    %11 = tpu.matmul %10, %0, %cst {dimension_numbers = #tpu.dot_dimension_numbers<[1], [0], [0], [1], [0, 0, 1, 1], [], []>} : vector<256x64xf32>, vector<64x128xf32>, vector<256x128xf32> -> vector<256x128xf32>
    %c0_10 = arith.constant 0 : index
    %c0_11 = arith.constant 0 : index
    %c0_12 = arith.constant 0 : index
    %12 = vector.load %arg5[%c0_10, %c0_11, %c0_12] : memref<1x1x128xf32, #tpu.memory_space<vmem>>, vector<1x1x128xf32>
    %13 = vector.shape_cast %12 : vector<1x1x128xf32> to vector<1x128xf32>
    %14 = vector.broadcast %13 : vector<1x128xf32> to vector<256x128xf32>
    %15 = arith.addf %11, %14 : vector<256x128xf32>
    %c0_13 = arith.constant 0 : index
    %c0_14 = arith.constant 0 : index
    %c0_15 = arith.constant 0 : index
    %16 = vector.load %arg7[%c0_13, %c0_14, %c0_15] : memref<1x256x128xf32, #tpu.memory_space<vmem>>, vector<1x256x128xf32>
    %17 = vector.shape_cast %16 : vector<1x256x128xf32> to vector<256x128xf32>
    %18 = vector.shape_cast %15 : vector<256x128xf32> to vector<1x256x128xf32>
    tpu.vector_store %arg7[%c0_13, %c0_14, %c0_15], %18 {strides = array<i32>} : memref<1x256x128xf32, #tpu.memory_space<vmem>>, vector<1x256x128xf32>,
    return
  }
  func.func @transform_0(%arg0: i32, %arg1: i32) -> (i32, i32, i32) {
    %c0_i32 = arith.constant 0 : i32
    %c0_i32_0 = arith.constant 0 : i32
    return %arg0, %arg1, %c0_i32 : i32, i32, i32
  }
  func.func @transform_1(%arg0: i32, %arg1: i32) -> (i32, i32, i32) {
    %c0_i32 = arith.constant 0 : i32
    %c0_i32_0 = arith.constant 0 : i32
    %c0_i32_1 = arith.constant 0 : i32
    return %arg0, %c0_i32, %c0_i32_0 : i32, i32, i32
  }
  func.func @transform_2(%arg0: i32, %arg1: i32) -> (i32, i32, i32) {
    %c0_i32 = arith.constant 0 : i32
    %c0_i32_0 = arith.constant 0 : i32
    %c0_i32_1 = arith.constant 0 : i32
    return %arg0, %c0_i32, %c0_i32_0 : i32, i32, i32
  }
  func.func @transform_3(%arg0: i32, %arg1: i32) -> (i32, i32, i32) {
    %c0_i32 = arith.constant 0 : i32
    %c0_i32_0 = arith.constant 0 : i32
    %c0_i32_1 = arith.constant 0 : i32
    return %arg0, %c0_i32, %c0_i32_0 : i32, i32, i32
  }
  func.func @transform_4(%arg0: i32, %arg1: i32) -> (i32, i32) {
    %c0_i32 = arith.constant 0 : i32
    %c0_i32_0 = arith.constant 0 : i32
    %c0_i32_1 = arith.constant 0 : i32
    return %c0_i32, %c0_i32_0 : i32, i32
  }
  func.func @transform_5(%arg0: i32, %arg1: i32) -> (i32, i32, i32) {
    %c0_i32 = arith.constant 0 : i32
    %c0_i32_0 = arith.constant 0 : i32
    return %arg0, %arg1, %c0_i32 : i32, i32, i32
  }
}

</mosaic_0001>

<llo_original>
// kernel: tpu_custom_call.1
$region0: #{tpu_custom_call.1}
  #allocation0 [shape = 'u32[]', space=smem, size = 0x4, offset = 0x4, fixed_abs, tag = 'smem constant byte address 0x4 - core index']
  #allocation1 [shape = 'u32[144,128]{1,0:T(1,128)}', space=vmem, size = 0x12000, scoped, tag = 'internal scratch']
  %s0 = inlined_call_operand.vmem [shape: f32[2,256,64], index: 0, kind: input, shape index: {}]
  %s1 = inlined_call_operand.vmem [shape: f32[2,1,64], index: 1, kind: input, shape index: {}]
  %s2 = inlined_call_operand.vmem [shape: f32[2,1,64], index: 2, kind: input, shape index: {}]
  %s3 = inlined_call_operand.vmem [shape: f32[2,1,128], index: 3, kind: input, shape index: {}]
  %s4 = inlined_call_operand.vmem [shape: f32[64,128], index: 4, kind: input, shape index: {}]
  %s5 = inlined_call_operand.hbm [shape: f32[2,256,128], index: 5, kind: output, shape index: {}]
  %s6 = sld [smem:[#allocation0]]
  $region53: #{tpu_custom_call.1} parent=0
    _
  %s8 = ssub.s32 1, %s6
  %s9 = scalar_select 0, %s8, %s6
  $region1: #{tpu_custom_call.1} parent=0
    #allocation2 [shape = 'u8[262144]{0}', space=vmem, size = 0x40000, scoped, tag = 'output window, operand 0']
    #allocation3 [shape = 's32[2]{0}', space=sflag, size = 0x8, scoped, tag = 'scoped memory for tpu_custom_call.1']
    %10 = vsyncpa [#allocation3], 0
    %s11 = scalar_lea.sflag [#allocation3], 1
    %12 = vsyncpa %s11, 0
    loop: start=0, step=1, limit=4
    $region2: #{tpu_custom_call.1} parent=1 // loop_pre_header
      _
    $region3: #{tpu_custom_call.1} parent=1 // loop_header
      %s14 = sphi 0, %s18
      %p15 = scmp.ge.s32.totalorder %s14, 4
      %s21 = sphi 0, %s33
      %s22 = sphi 0, %s29
      %s23 = sphi 0, %s21
      %s24 = sphi 0, %s22
      %s25 = sphi 0, %s23
      %s26 = sphi 0, %s24
      %s38 = sphi 0, %s40
      %s41 = sphi 0, %s38
      %s42 = sphi 0, %s41
      %s58 = sphi 0, %s42
      %s64 = sphi 0, %s66
      %s67 = sphi 0, %s64
      %s68 = sphi 0, %s67
      %s84 = sphi 0, %s68
      %s90 = sphi 0, %s92
      %s93 = sphi 0, %s90
      %s94 = sphi 0, %s93
      %s110 = sphi 0, %s94
      %s116 = sphi 0, %s118
      %s119 = sphi 0, %s116
      %s120 = sphi 0, %s119
      %s136 = sphi 0, %s120
      %s140 = sphi 0, %s140
      %s142 = sphi 0, %s140
      %s143 = sphi 0, %s142
      %s157 = sphi 0, %s143
      %s165 = sphi 0, %s167
      %s168 = sphi 0, %s165
      %s169 = sphi 0, %s168
      %s185 = sphi 0, %s169
    $region4: #{tpu_custom_call.1} parent=1 // loop_header_branch
      %17 = sbr.rel (%p15) target = $region8
    $region5: #{tpu_custom_call.1} parent=1 // loop_body
      %s19 = ssub.s32 %s14, 1
      %s20 = ssub.s32 %s14, 2
      %s27 = sadd.s32 1, %s22
      %p28 = scmp.ge.s32.totalorder %s27, 1
      %s29 = scalar_select %p28, 0, %s27
      %s30 = sadd.s32 1, %s21
      %s31 = scalar_select %p28, %s30, %s21
      %p32 = scmp.ge.s32.totalorder %s31, 2
      %s33 = scalar_select %p32, 0, %s31
      %s34 = ssub.s32 %s21, %s33
      %s35 = ssub.s32 %s22, %s29
      %s36 = sor.u32 %s34, %s35
      %p37 = scmp.eq.s32.totalorder %s36, 0
      %s39 = sadd.s32 %s38, 1
      %s40 = scalar_select %p37, %s38, %s39
      %p43 = pneg %p37
      %p44 = scmp.eq.s32.totalorder %s14, 1
      %p45 = por %p43, %p44
      %p46 = scmp.ne.s32.totalorder %s38, %s41
      %p47 = scmp.eq.s32.totalorder %s14, 0
      %p48 = por %p46, %p47
      %p49 = scmp.ne.s32.totalorder %s38, %s41
      %p50 = scmp.eq.s32.totalorder %s19, 1
      %p51 = por %p49, %p50
      %p52 = scmp.ne.s32.totalorder %s41, %s42
      %p53 = scmp.eq.s32.totalorder %s19, 0
      %p54 = por %p52, %p53
      %p55 = scmp.ne.s32.totalorder %s41, %s42
      %p56 = scmp.eq.s32.totalorder %s20, 1
      %p57 = por %p55, %p56
      %p59 = scmp.ne.s32.totalorder %s42, %s58
      %p60 = scmp.eq.s32.totalorder %s20, 0
      %p61 = por %p59, %p60
      %s62 = ssub.s32 %s21, %s33
      %p63 = scmp.eq.s32.totalorder %s62, 0
      %s65 = sadd.s32 %s64, 1
      %s66 = scalar_select %p63, %s64, %s65
      %p69 = pneg %p63
      %p70 = scmp.eq.s32.totalorder %s14, 1
      %p71 = por %p69, %p70
      %p72 = scmp.ne.s32.totalorder %s64, %s67
      %p73 = scmp.eq.s32.totalorder %s14, 0
      %p74 = por %p72, %p73
      %p75 = scmp.ne.s32.totalorder %s64, %s67
      %p76 = scmp.eq.s32.totalorder %s19, 1
      %p77 = por %p75, %p76
      %p78 = scmp.ne.s32.totalorder %s67, %s68
      %p79 = scmp.eq.s32.totalorder %s19, 0
      %p80 = por %p78, %p79
      %p81 = scmp.ne.s32.totalorder %s67, %s68
      %p82 = scmp.eq.s32.totalorder %s20, 1
      %p83 = por %p81, %p82
      %p85 = scmp.ne.s32.totalorder %s68, %s84
      %p86 = scmp.eq.s32.totalorder %s20, 0
      %p87 = por %p85, %p86
      %s88 = ssub.s32 %s21, %s33
      %p89 = scmp.eq.s32.totalorder %s88, 0
      %s91 = sadd.s32 %s90, 1
      %s92 = scalar_select %p89, %s90, %s91
      %p95 = pneg %p89
      %p96 = scmp.eq.s32.totalorder %s14, 1
      %p97 = por %p95, %p96
      %p98 = scmp.ne.s32.totalorder %s90, %s93
      %p99 = scmp.eq.s32.totalorder %s14, 0
      %p100 = por %p98, %p99
      %p101 = scmp.ne.s32.totalorder %s90, %s93
      %p102 = scmp.eq.s32.totalorder %s19, 1
      %p103 = por %p101, %p102
      %p104 = scmp.ne.s32.totalorder %s93, %s94
      %p105 = scmp.eq.s32.totalorder %s19, 0
      %p106 = por %p104, %p105
      %p107 = scmp.ne.s32.totalorder %s93, %s94
      %p108 = scmp.eq.s32.totalorder %s20, 1
      %p109 = por %p107, %p108
      %p111 = scmp.ne.s32.totalorder %s94, %s110
      %p112 = scmp.eq.s32.totalorder %s20, 0
      %p113 = por %p111, %p112
      %s114 = ssub.s32 %s21, %s33
      %p115 = scmp.eq.s32.totalorder %s114, 0
      %s117 = sadd.s32 %s116, 1
      %s118 = scalar_select %p115, %s116, %s117
      %p121 = pneg %p115
      %p122 = scmp.eq.s32.totalorder %s14, 1
      %p123 = por %p121, %p122
      %p124 = scmp.ne.s32.totalorder %s116, %s119
      %p125 = scmp.eq.s32.totalorder %s14, 0
      %p126 = por %p124, %p125
      %p127 = scmp.ne.s32.totalorder %s116, %s119
      %p128 = scmp.eq.s32.totalorder %s19, 1
      %p129 = por %p127, %p128
      %p130 = scmp.ne.s32.totalorder %s119, %s120
      %p131 = scmp.eq.s32.totalorder %s19, 0
      %p132 = por %p130, %p131
      %p133 = scmp.ne.s32.totalorder %s119, %s120
      %p134 = scmp.eq.s32.totalorder %s20, 1
      %p135 = por %p133, %p134
      %p137 = scmp.ne.s32.totalorder %s120, %s136
      %p138 = scmp.eq.s32.totalorder %s20, 0
      %p139 = por %p137, %p138
      %s141 = sadd.s32 %s140, 1
      %p144 = scmp.eq.s32.totalorder %s14, 1
      %p145 = scmp.ne.s32.totalorder %s140, %s142
      %p146 = scmp.eq.s32.totalorder %s14, 0
      %p147 = por %p145, %p146
      %p148 = scmp.ne.s32.totalorder %s140, %s142
      %p149 = scmp.eq.s32.totalorder %s19, 1
      %p150 = por %p148, %p149
      %p151 = scmp.ne.s32.totalorder %s142, %s143
      %p152 = scmp.eq.s32.totalorder %s19, 0
      %p153 = por %p151, %p152
      %p154 = scmp.ne.s32.totalorder %s142, %s143
      %p155 = scmp.eq.s32.totalorder %s20, 1
      %p156 = por %p154, %p155
      %p158 = scmp.ne.s32.totalorder %s143, %s157
      %p159 = scmp.eq.s32.totalorder %s20, 0
      %p160 = por %p158, %p159
      %s161 = ssub.s32 %s21, %s33
      %s162 = ssub.s32 %s22, %s29
      %s163 = sor.u32 %s161, %s162
      %p164 = scmp.eq.s32.totalorder %s163, 0
      %s166 = sadd.s32 %s165, 1
      %s167 = scalar_select %p164, %s165, %s166
      %p170 = pneg %p164
      %p171 = scmp.eq.s32.totalorder %s14, 1
      %p172 = por %p170, %p171
      %p173 = scmp.ne.s32.totalorder %s165, %s168
      %p174 = scmp.eq.s32.totalorder %s14, 0
      %p175 = por %p173, %p174
      %p176 = scmp.ne.s32.totalorder %s165, %s168
      %p177 = scmp.eq.s32.totalorder %s19, 1
      %p178 = por %p176, %p177
      %p179 = scmp.ne.s32.totalorder %s168, %s169
      %p180 = scmp.eq.s32.totalorder %s19, 0
      %p181 = por %p179, %p180
      %p182 = scmp.ne.s32.totalorder %s168, %s169
      %p183 = scmp.eq.s32.totalorder %s20, 1
      %p184 = por %p182, %p183
      %p186 = scmp.ne.s32.totalorder %s169, %s185
      %p187 = scmp.eq.s32.totalorder %s20, 0
      %p188 = por %p186, %p187
      %p189 = scmp.le.s32.totalorder 1, %s14
      %p190 = scmp.lt.s32.totalorder %s14, 3
      %p191 = pnand %p189, %p190
      %p192 = pneg %p191
      // Predicated region
      $region9: #{tpu_custom_call.1} parent=5 // pred_check
        _
      $region10: #{tpu_custom_call.1} parent=5 // pred_check_branch
        %194 = sbr.rel (%p191) target = $region12
      $region11: #{tpu_custom_call.1} parent=5 // pred_region
        %s195 = ssub.s32 %s14, 1
        // Predicated region
        $region13: #{tpu_custom_call.1} parent=11 // pred_check
          %p196 = pneg %p153
        $region14: #{tpu_custom_call.1} parent=11 // pred_check_branch
          %198 = sbr.rel (%p196) target = $region16
        $region15: #{tpu_custom_call.1} parent=11 // pred_region
          _
        $region16: #{tpu_custom_call.1} parent=11 // pred_fallthru
          _
      $region12: #{tpu_custom_call.1} parent=5 // pred_fallthru
        _
      %p199 = scmp.lt.s32.totalorder %s14, 2
      // Predicated region
      $region17: #{tpu_custom_call.1} parent=5 // pred_check
        %p200 = pneg %p199
      $region18: #{tpu_custom_call.1} parent=5 // pred_check_branch
        %202 = sbr.rel (%p200) target = $region20
      $region19: #{tpu_custom_call.1} parent=5 // pred_region
        // Predicated region
        $region21: #{tpu_custom_call.1} parent=19 // pred_check
          %p203 = pneg %p48
        $region22: #{tpu_custom_call.1} parent=19 // pred_check_branch
          %205 = sbr.rel (%p203) target = $region24
        $region23: #{tpu_custom_call.1} parent=19 // pred_region
          %s206 = smul.u32 32, %s22
          %p207 = scmp.lt.s32.totalorder %s21, 1
          %s208 = scalar_select %p207, %s21, 1
          %p209 = scmp.lt.s32.totalorder %s206, 31
          %s210 = scalar_select %p209, %s206, 31
          %s211 = smul.addr %s208, 32
          %s212 = sadd.s32 %s210, %s211
          %s213 = smul.addr %s212, 8
          %s214 = scalar_lea.vmem %s0, %s213
          %s215 = smul.u32 32, %s22
        $region24: #{tpu_custom_call.1} parent=19 // pred_fallthru
          _
        // Predicated region
        $region25: #{tpu_custom_call.1} parent=19 // pred_check
          %p216 = pneg %p74
        $region26: #{tpu_custom_call.1} parent=19 // pred_check_branch
          %218 = sbr.rel (%p216) target = $region28
        $region27: #{tpu_custom_call.1} parent=19 // pred_region
          %p219 = scmp.lt.s32.totalorder %s21, 1
          %s220 = scalar_select %p219, %s21, 1
          %s221 = scalar_lea.vmem %s1, %s220
        $region28: #{tpu_custom_call.1} parent=19 // pred_fallthru
          _
        // Predicated region
        $region29: #{tpu_custom_call.1} parent=19 // pred_check
          %p222 = pneg %p100
        $region30: #{tpu_custom_call.1} parent=19 // pred_check_branch
          %224 = sbr.rel (%p222) target = $region32
        $region31: #{tpu_custom_call.1} parent=19 // pred_region
          %p225 = scmp.lt.s32.totalorder %s21, 1
          %s226 = scalar_select %p225, %s21, 1
          %s227 = scalar_lea.vmem %s2, %s226
        $region32: #{tpu_custom_call.1} parent=19 // pred_fallthru
          _
        // Predicated region
        $region33: #{tpu_custom_call.1} parent=19 // pred_check
          %p228 = pneg %p126
        $region34: #{tpu_custom_call.1} parent=19 // pred_check_branch
          %230 = sbr.rel (%p228) target = $region36
        $region35: #{tpu_custom_call.1} parent=19 // pred_region
          %p231 = scmp.lt.s32.totalorder %s21, 1
          %s232 = scalar_select %p231, %s21, 1
          %s233 = scalar_lea.vmem %s3, %s232
        $region36: #{tpu_custom_call.1} parent=19 // pred_fallthru
          _
      $region20: #{tpu_custom_call.1} parent=5 // pred_fallthru
        _
      %p234 = scmp.le.s32.totalorder 1, %s14
      %p235 = scmp.lt.s32.totalorder %s14, 3
      %p236 = pnand %p234, %p235
      %p237 = pneg %p236
      // Predicated region
      $region37: #{tpu_custom_call.1} parent=5 // pred_check
        _
      $region38: #{tpu_custom_call.1} parent=5 // pred_check_branch
        %239 = sbr.rel (%p236) target = $region40
      $region39: #{tpu_custom_call.1} parent=5 // pred_region
        %s240 = ssub.s32 %s14, 1
        %s241 = smul.u32 32, %s24
        %p242 = scmp.lt.s32.totalorder %s23, 1
        %s243 = scalar_select %p242, %s23, 1
        %p244 = scmp.lt.s32.totalorder %s241, 31
        %s245 = scalar_select %p244, %s241, 31
        %s246 = smul.addr %s243, 32
        %s247 = sadd.s32 %s245, %s246
        %s248 = smul.addr %s247, 8
        %s249 = scalar_lea.vmem %s0, %s248
        %p250 = pneg %p54
        %p251 = pneg %p51
        %p252 = scmp.lt.s32.totalorder %s23, 1
        %s253 = scalar_select %p252, %s23, 1
        %s254 = scalar_lea.vmem %s1, %s253
        %p255 = pneg %p80
        %p256 = pneg %p77
        %p257 = scmp.lt.s32.totalorder %s23, 1
        %s258 = scalar_select %p257, %s23, 1
        %s259 = scalar_lea.vmem %s2, %s258
        %p260 = pneg %p106
        %p261 = pneg %p103
        %p262 = scmp.lt.s32.totalorder %s23, 1
        %s263 = scalar_select %p262, %s23, 1
        %s264 = scalar_lea.vmem %s3, %s263
        %p265 = pneg %p132
        %p266 = pneg %p129
        %p267 = pneg %p153
        %p268 = pneg %p150
        %p269 = pneg %p181
        %p270 = pneg %p178
        %s271 = sand.u32 %s168, 1
        %s272 = scalar_lea.sflag [#allocation3], %s271
        %s273 = sand.u32 %s168, 1
        %s274 = smul.addr %s273, 256
        %s275 = scalar_lea.vmem [#allocation2], %s274
        %s276 = smul.u32 32, %s24
        %p277 = scmp.lt.s32.totalorder %s23, 1
        %s278 = scalar_select %p277, %s23, 1
        %p279 = scmp.lt.s32.totalorder %s276, 31
        %s280 = scalar_select %p279, %s276, 31
        %s281 = smul.addr %s278, 32
        %s282 = sadd.s32 %s280, %s281
        %s283 = smul.addr %s282, 8
        %s284 = scalar_lea.vmem %s0, %s283
        %s285 = smul.u32 32, %s24
        %p286 = scmp.lt.s32.totalorder %s23, 1
        %s287 = scalar_select %p286, %s23, 1
        %s288 = scalar_lea.vmem %s1, %s287
        %p289 = scmp.lt.s32.totalorder %s23, 1
        %s290 = scalar_select %p289, %s23, 1
        %s291 = scalar_lea.vmem %s2, %s290
        %p292 = scmp.lt.s32.totalorder %s23, 1
        %s293 = scalar_select %p292, %s23, 1
        %s294 = scalar_lea.vmem %s3, %s293
        %s295 = smul.u32 32, %s24
        %v296 = vld [vmem:[%s4] sm:$0xff]
        %v297 = vld [vmem:[%s4 + $0x8] sm:$0xff]
        %v298 = vld [vmem:[%s4 + $0x10] sm:$0xff]
        %v299 = vld [vmem:[%s4 + $0x18] sm:$0xff]
        %v300 = vld [vmem:[%s4 + $0x20] sm:$0xff]
        %v301 = vld [vmem:[%s4 + $0x28] sm:$0xff]
        %v302 = vld [vmem:[%s4 + $0x30] sm:$0xff]
        %v303 = vld [vmem:[%s4 + $0x38] sm:$0xff]
        %v304 = vld [vmem:[%s284] sm:$0xff]
        %v305 = vld [vmem:[%s284 + $0x8] sm:$0xff]
        %v306 = vld [vmem:[%s284 + $0x10] sm:$0xff]
        %v307 = vld [vmem:[%s284 + $0x18] sm:$0xff]
        %v308 = vld [vmem:[%s284 + $0x20] sm:$0xff]
        %v309 = vld [vmem:[%s284 + $0x28] sm:$0xff]
        %v310 = vld [vmem:[%s284 + $0x30] sm:$0xff]
        %v311 = vld [vmem:[%s284 + $0x38] sm:$0xff]
        %v312 = vld [vmem:[%s284 + $0x40] sm:$0xff]
        %v313 = vld [vmem:[%s284 + $0x48] sm:$0xff]
        %v314 = vld [vmem:[%s284 + $0x50] sm:$0xff]
        %v315 = vld [vmem:[%s284 + $0x58] sm:$0xff]
        %v316 = vld [vmem:[%s284 + $0x60] sm:$0xff]
        %v317 = vld [vmem:[%s284 + $0x68] sm:$0xff]
        %v318 = vld [vmem:[%s284 + $0x70] sm:$0xff]
        %v319 = vld [vmem:[%s284 + $0x78] sm:$0xff]
        %v320 = vld [vmem:[%s284 + $0x80] sm:$0xff]
        %v321 = vld [vmem:[%s284 + $0x88] sm:$0xff]
        %v322 = vld [vmem:[%s284 + $0x90] sm:$0xff]
        %v323 = vld [vmem:[%s284 + $0x98] sm:$0xff]
        %v324 = vld [vmem:[%s284 + $0xa0] sm:$0xff]
        %v325 = vld [vmem:[%s284 + $0xa8] sm:$0xff]
        %v326 = vld [vmem:[%s284 + $0xb0] sm:$0xff]
        %v327 = vld [vmem:[%s284 + $0xb8] sm:$0xff]
        %v328 = vld [vmem:[%s284 + $0xc0] sm:$0xff]
        %v329 = vld [vmem:[%s284 + $0xc8] sm:$0xff]
        %v330 = vld [vmem:[%s284 + $0xd0] sm:$0xff]
        %v331 = vld [vmem:[%s284 + $0xd8] sm:$0xff]
        %v332 = vld [vmem:[%s284 + $0xe0] sm:$0xff]
        %v333 = vld [vmem:[%s284 + $0xe8] sm:$0xff]
        %v334 = vld [vmem:[%s284 + $0xf0] sm:$0xff]
        %v335 = vld [vmem:[%s284 + $0xf8] sm:$0xff]
        %v336 = vld [vmem:[%s291] sm:$0x1]
        %v338 = vlaneseq
        %v339 = vshrl.u32 %v338, 7
        %v340 = vsub.s32 0, %v339
        %v341 = vrot.slane %v336, %v340
        %v343 = vadd.f32 %v304, %v341
        %v344 = vadd.f32 %v305, %v341
        %v345 = vadd.f32 %v306, %v341
        %v346 = vadd.f32 %v307, %v341
        %v347 = vadd.f32 %v308, %v341
        %v348 = vadd.f32 %v309, %v341
        %v349 = vadd.f32 %v310, %v341
        %v350 = vadd.f32 %v311, %v341
        %v351 = vadd.f32 %v312, %v341
        %v352 = vadd.f32 %v313, %v341
        %v353 = vadd.f32 %v314, %v341
        %v354 = vadd.f32 %v315, %v341
        %v355 = vadd.f32 %v316, %v341
        %v356 = vadd.f32 %v317, %v341
        %v357 = vadd.f32 %v318, %v341
        %v358 = vadd.f32 %v319, %v341
        %v359 = vadd.f32 %v320, %v341
        %v360 = vadd.f32 %v321, %v341
        %v361 = vadd.f32 %v322, %v341
        %v362 = vadd.f32 %v323, %v341
        %v363 = vadd.f32 %v324, %v341
        %v364 = vadd.f32 %v325, %v341
        %v365 = vadd.f32 %v326, %v341
        %v366 = vadd.f32 %v327, %v341
        %v367 = vadd.f32 %v328, %v341
        %v368 = vadd.f32 %v329, %v341
        %v369 = vadd.f32 %v330, %v341
        %v370 = vadd.f32 %v331, %v341
        %v371 = vadd.f32 %v332, %v341
        %v372 = vadd.f32 %v333, %v341
        %v373 = vadd.f32 %v334, %v341
        %v374 = vadd.f32 %v335, %v341
        %v375 = vld [vmem:[%s288] sm:$0x1]
        %v377 = vlaneseq
        %v378 = vshrl.u32 %v377, 7
        %v379 = vsub.s32 0, %v378
        %v380 = vrot.slane %v375, %v379
        %v382 = vmul.f32 %v343, %v380
        %v383 = vmul.f32 %v344, %v380
        %v384 = vmul.f32 %v345, %v380
        %v385 = vmul.f32 %v346, %v380
        %v386 = vmul.f32 %v347, %v380
        %v387 = vmul.f32 %v348, %v380
        %v388 = vmul.f32 %v349, %v380
        %v389 = vmul.f32 %v350, %v380
        %v390 = vmul.f32 %v351, %v380
        %v391 = vmul.f32 %v352, %v380
        %v392 = vmul.f32 %v353, %v380
        %v393 = vmul.f32 %v354, %v380
        %v394 = vmul.f32 %v355, %v380
        %v395 = vmul.f32 %v356, %v380
        %v396 = vmul.f32 %v357, %v380
        %v397 = vmul.f32 %v358, %v380
        %v398 = vmul.f32 %v359, %v380
        %v399 = vmul.f32 %v360, %v380
        %v400 = vmul.f32 %v361, %v380
        %v401 = vmul.f32 %v362, %v380
        %v402 = vmul.f32 %v363, %v380
        %v403 = vmul.f32 %v364, %v380
        %v404 = vmul.f32 %v365, %v380
        %v405 = vmul.f32 %v366, %v380
        %v406 = vmul.f32 %v367, %v380
        %v407 = vmul.f32 %v368, %v380
        %v408 = vmul.f32 %v369, %v380
        %v409 = vmul.f32 %v370, %v380
        %v410 = vmul.f32 %v371, %v380
        %v411 = vmul.f32 %v372, %v380
        %v412 = vmul.f32 %v373, %v380
        %v413 = vmul.f32 %v374, %v380
        %v414 = vld [vmem:[%s294] sm:$0x1]
        %v416 = vlaneseq
        %v417 = vshrl.u32 %v416, 7
        %v418 = vsub.s32 0, %v417
        %v419 = vrot.slane %v414, %v418
        %vm421 = vcmask 523264
        %v423 = vsel %vm421, %v382, 0
        %v426 = vsel %vm421, %v383, 0
        %v429 = vsel %vm421, %v384, 0
        %v432 = vsel %vm421, %v385, 0
        %v435 = vsel %vm421, %v386, 0
        %v438 = vsel %vm421, %v387, 0
        %v441 = vsel %vm421, %v388, 0
        %v444 = vsel %vm421, %v389, 0
        %v447 = vsel %vm421, %v390, 0
        %v450 = vsel %vm421, %v391, 0
        %v453 = vsel %vm421, %v392, 0
        %v456 = vsel %vm421, %v393, 0
        %v459 = vsel %vm421, %v394, 0
        %v462 = vsel %vm421, %v395, 0
        %v465 = vsel %vm421, %v396, 0
        %v468 = vsel %vm421, %v397, 0
        %v471 = vsel %vm421, %v398, 0
        %v474 = vsel %vm421, %v399, 0
        %v477 = vsel %vm421, %v400, 0
        %v480 = vsel %vm421, %v401, 0
        %v483 = vsel %vm421, %v402, 0
        %v486 = vsel %vm421, %v403, 0
        %v489 = vsel %vm421, %v404, 0
        %v492 = vsel %vm421, %v405, 0
        %v495 = vsel %vm421, %v406, 0
        %v498 = vsel %vm421, %v407, 0
        %v501 = vsel %vm421, %v408, 0
        %v504 = vsel %vm421, %v409, 0
        %v507 = vsel %vm421, %v410, 0
        %v510 = vsel %vm421, %v411, 0
        %v513 = vsel %vm421, %v412, 0
        %v516 = vsel %vm421, %v413, 0
        %518 = vmatprep.subr.mxu0 0.0
        %519 = vmatpush1.msra.mxu0 %v296
        %520 = vmatprep.subr.mxu0 0.0
        %521 = vmatpush1.msra.mxu0 %v297
        %522 = vmatprep.subr.mxu0 0.0
        %523 = vmatpush1.msra.mxu0 %v298
        %524 = vmatprep.subr.mxu0 0.0
        %525 = vmatpush1.msra.mxu0 %v299
        %526 = vmatprep.subr.mxu0 0.0
        %527 = vmatpush1.msra.mxu0 %v300
        %528 = vmatprep.subr.mxu0 0.0
        %529 = vmatpush1.msra.mxu0 %v301
        %530 = vmatprep.subr.mxu0 0.0
        %531 = vmatpush1.msra.mxu0 %v302
        %532 = vmatprep.subr.mxu0 0.0
        %533 = vmatpush1.msra.mxu0 %v303
        %534 = vmatprep.subr.mxu0 0.0
        %535 = vmatpush1.msra.mxu0 0.0
        %536 = vmatprep.subr.mxu0 0.0
        %537 = vmatpush1.msra.mxu0 0.0
        %538 = vmatprep.subr.mxu0 0.0
        %539 = vmatpush1.msra.mxu0 0.0
        %540 = vmatprep.subr.mxu0 0.0
        %541 = vmatpush1.msra.mxu0 0.0
        %542 = vmatprep.subr.mxu0 0.0
        %543 = vmatpush1.msra.mxu0 0.0
        %544 = vmatprep.subr.mxu0 0.0
        %545 = vmatpush1.msra.mxu0 0.0
        %546 = vmatprep.subr.mxu0 0.0
        %547 = vmatpush1.msra.mxu0 0.0
        %548 = vmatprep.subr.mxu0 0.0
        %549 = vmatpush1.msra.mxu0 0.0
        %550 = vmatprep.subr.mxu0 0.0
        %551 = vmatpush1.msra.mxu0 0.0
        %552 = vmatprep.subr.mxu0 0.0
        %553 = vmatpush1.msra.mxu0 0.0
        %554 = vmatprep.subr.mxu0 0.0
        %555 = vmatpush1.msra.mxu0 0.0
        %556 = vmatprep.subr.mxu0 0.0
        %557 = vmatpush1.msra.mxu0 0.0
        %558 = vmatprep.subr.mxu0 0.0
        %559 = vmatpush1.msra.mxu0 0.0
        %560 = vmatprep.subr.mxu0 0.0
        %561 = vmatpush1.msra.mxu0 0.0
        %562 = vmatprep.subr.mxu0 0.0
        %563 = vmatpush1.msra.mxu0 0.0
        %564 = vmatprep.subr.mxu0 0.0
        %565 = vmatpush1.msra.mxu0 0.0
        %566 = vmatprep.subr.mxu0 0.0
        %567 = vmatpush1.msra.mxu0 0.0
        %568 = vmatprep.subr.mxu0 0.0
        %569 = vmatpush1.msra.mxu0 0.0
        %570 = vmatprep.subr.mxu0 0.0
        %571 = vmatpush1.msra.mxu0 0.0
        %572 = vmatprep.subr.mxu0 0.0
        %573 = vmatpush1.msra.mxu0 0.0
        %574 = vmatprep.subr.mxu0 0.0
        %575 = vmatpush1.msra.mxu0 0.0
        %576 = vmatprep.subr.mxu0 0.0
        %577 = vmatpush1.msra.mxu0 0.0
        %578 = vmatprep.subr.mxu0 0.0
        %579 = vmatpush1.msra.mxu0 0.0
        %580 = vmatprep.subr.mxu0 0.0
        %581 = vmatpush1.msra.mxu0 0.0
        %582 = vmatprep.mubr.f32.mxu0 0.0
        %583 = vmatmul.mubr.f32.gmra.mrb[0].mxu0 %v423
        %v584 = vpop.f32.mrb[0].mxu0
        %v585 = vadd.f32 %v419, %v584
        %v586 = vpop.f32.mrb[0].mxu0
        %587 = vmatprep.mubr.f32.mxu0 0.0
        %588 = vmatmul.mubr.f32.gmra.mrb[0].mxu0 %v426
        %v589 = vpop.f32.mrb[0].mxu0
        %v590 = vadd.f32 %v419, %v589
        %v591 = vpop.f32.mrb[0].mxu0
        %592 = vmatprep.mubr.f32.mxu0 0.0
        %593 = vmatmul.mubr.f32.gmra.mrb[0].mxu0 %v429
        %v594 = vpop.f32.mrb[0].mxu0
        %v595 = vadd.f32 %v419, %v594
        %v596 = vpop.f32.mrb[0].mxu0
        %597 = vmatprep.mubr.f32.mxu0 0.0
        %598 = vmatmul.mubr.f32.gmra.mrb[0].mxu0 %v432
        %v599 = vpop.f32.mrb[0].mxu0
        %v600 = vadd.f32 %v419, %v599
        %v601 = vpop.f32.mrb[0].mxu0
        %602 = vmatprep.mubr.f32.mxu0 0.0
        %603 = vmatmul.mubr.f32.gmra.mrb[0].mxu0 %v435
        %v604 = vpop.f32.mrb[0].mxu0
        %v605 = vadd.f32 %v419, %v604
        %v606 = vpop.f32.mrb[0].mxu0
        %607 = vmatprep.mubr.f32.mxu0 0.0
        %608 = vmatmul.mubr.f32.gmra.mrb[0].mxu0 %v438
        %v609 = vpop.f32.mrb[0].mxu0
        %v610 = vadd.f32 %v419, %v609
        %v611 = vpop.f32.mrb[0].mxu0
        %612 = vmatprep.mubr.f32.mxu0 0.0
        %613 = vmatmul.mubr.f32.gmra.mrb[0].mxu0 %v441
        %v614 = vpop.f32.mrb[0].mxu0
        %v615 = vadd.f32 %v419, %v614
        %v616 = vpop.f32.mrb[0].mxu0
        %617 = vmatprep.mubr.f32.mxu0 0.0
        %618 = vmatmul.mubr.f32.gmra.mrb[0].mxu0 %v444
        %v619 = vpop.f32.mrb[0].mxu0
        %v620 = vadd.f32 %v419, %v619
        %v621 = vpop.f32.mrb[0].mxu0
        %622 = vmatprep.mubr.f32.mxu0 0.0
        %623 = vmatmul.mubr.f32.gmra.mrb[0].mxu0 %v447
        %v624 = vpop.f32.mrb[0].mxu0
        %v625 = vadd.f32 %v419, %v624
        %v626 = vpop.f32.mrb[0].mxu0
        %627 = vmatprep.mubr.f32.mxu0 0.0
        %628 = vmatmul.mubr.f32.gmra.mrb[0].mxu0 %v450
        %v629 = vpop.f32.mrb[0].mxu0
        %v630 = vadd.f32 %v419, %v629
        %v631 = vpop.f32.mrb[0].mxu0
        %632 = vmatprep.mubr.f32.mxu0 0.0
        %633 = vmatmul.mubr.f32.gmra.mrb[0].mxu0 %v453
        %v634 = vpop.f32.mrb[0].mxu0
        %v635 = vadd.f32 %v419, %v634
        %v636 = vpop.f32.mrb[0].mxu0
        %637 = vmatprep.mubr.f32.mxu0 0.0
        %638 = vmatmul.mubr.f32.gmra.mrb[0].mxu0 %v456
        %v639 = vpop.f32.mrb[0].mxu0
        %v640 = vadd.f32 %v419, %v639
        %v641 = vpop.f32.mrb[0].mxu0
        %642 = vmatprep.mubr.f32.mxu0 0.0
        %643 = vmatmul.mubr.f32.gmra.mrb[0].mxu0 %v459
        %v644 = vpop.f32.mrb[0].mxu0
        %v645 = vadd.f32 %v419, %v644
        %v646 = vpop.f32.mrb[0].mxu0
        %647 = vmatprep.mubr.f32.mxu0 0.0
        %648 = vmatmul.mubr.f32.gmra.mrb[0].mxu0 %v462
        %v649 = vpop.f32.mrb[0].mxu0
        %v650 = vadd.f32 %v419, %v649
        %v651 = vpop.f32.mrb[0].mxu0
        %652 = vmatprep.mubr.f32.mxu0 0.0
        %653 = vmatmul.mubr.f32.gmra.mrb[0].mxu0 %v465
        %v654 = vpop.f32.mrb[0].mxu0
        %v655 = vadd.f32 %v419, %v654
        %v656 = vpop.f32.mrb[0].mxu0
        %657 = vmatprep.mubr.f32.mxu0 0.0
        %658 = vmatmul.mubr.f32.gmra.mrb[0].mxu0 %v468
        %v659 = vpop.f32.mrb[0].mxu0
        %v660 = vadd.f32 %v419, %v659
        %v661 = vpop.f32.mrb[0].mxu0
        %662 = vmatprep.mubr.f32.mxu0 0.0
        %663 = vmatmul.mubr.f32.gmra.mrb[0].mxu0 %v471
        %v664 = vpop.f32.mrb[0].mxu0
        %v665 = vadd.f32 %v419, %v664
        %v666 = vpop.f32.mrb[0].mxu0
        %667 = vmatprep.mubr.f32.mxu0 0.0
        %668 = vmatmul.mubr.f32.gmra.mrb[0].mxu0 %v474
        %v669 = vpop.f32.mrb[0].mxu0
        %v670 = vadd.f32 %v419, %v669
        %v671 = vpop.f32.mrb[0].mxu0
        %672 = vmatprep.mubr.f32.mxu0 0.0
        %673 = vmatmul.mubr.f32.gmra.mrb[0].mxu0 %v477
        %v674 = vpop.f32.mrb[0].mxu0
        %v675 = vadd.f32 %v419, %v674
        %v676 = vpop.f32.mrb[0].mxu0
        %677 = vmatprep.mubr.f32.mxu0 0.0
        %678 = vmatmul.mubr.f32.gmra.mrb[0].mxu0 %v480
        %v679 = vpop.f32.mrb[0].mxu0
        %v680 = vadd.f32 %v419, %v679
        %v681 = vpop.f32.mrb[0].mxu0
        %682 = vmatprep.mubr.f32.mxu0 0.0
        %683 = vmatmul.mubr.f32.gmra.mrb[0].mxu0 %v483
        %v684 = vpop.f32.mrb[0].mxu0
        %v685 = vadd.f32 %v419, %v684
        %v686 = vpop.f32.mrb[0].mxu0
        %687 = vmatprep.mubr.f32.mxu0 0.0
        %688 = vmatmul.mubr.f32.gmra.mrb[0].mxu0 %v486
        %v689 = vpop.f32.mrb[0].mxu0
        %v690 = vadd.f32 %v419, %v689
        %v691 = vpop.f32.mrb[0].mxu0
        %692 = vmatprep.mubr.f32.mxu0 0.0
        %693 = vmatmul.mubr.f32.gmra.mrb[0].mxu0 %v489
        %v694 = vpop.f32.mrb[0].mxu0
        %v695 = vadd.f32 %v419, %v694
        %v696 = vpop.f32.mrb[0].mxu0
        %697 = vmatprep.mubr.f32.mxu0 0.0
        %698 = vmatmul.mubr.f32.gmra.mrb[0].mxu0 %v492
        %v699 = vpop.f32.mrb[0].mxu0
        %v700 = vadd.f32 %v419, %v699
        %v701 = vpop.f32.mrb[0].mxu0
        %702 = vmatprep.mubr.f32.mxu0 0.0
        %703 = vmatmul.mubr.f32.gmra.mrb[0].mxu0 %v495
        %v704 = vpop.f32.mrb[0].mxu0
        %v705 = vadd.f32 %v419, %v704
        %v706 = vpop.f32.mrb[0].mxu0
        %707 = vmatprep.mubr.f32.mxu0 0.0
        %708 = vmatmul.mubr.f32.gmra.mrb[0].mxu0 %v498
        %v709 = vpop.f32.mrb[0].mxu0
        %v710 = vadd.f32 %v419, %v709
        %v711 = vpop.f32.mrb[0].mxu0
        %712 = vmatprep.mubr.f32.mxu0 0.0
        %713 = vmatmul.mubr.f32.gmra.mrb[0].mxu0 %v501
        %v714 = vpop.f32.mrb[0].mxu0
        %v715 = vadd.f32 %v419, %v714
        %v716 = vpop.f32.mrb[0].mxu0
        %717 = vmatprep.mubr.f32.mxu0 0.0
        %718 = vmatmul.mubr.f32.gmra.mrb[0].mxu0 %v504
        %v719 = vpop.f32.mrb[0].mxu0
        %v720 = vadd.f32 %v419, %v719
        %v721 = vpop.f32.mrb[0].mxu0
        %722 = vmatprep.mubr.f32.mxu0 0.0
        %723 = vmatmul.mubr.f32.gmra.mrb[0].mxu0 %v507
        %v724 = vpop.f32.mrb[0].mxu0
        %v725 = vadd.f32 %v419, %v724
        %v726 = vpop.f32.mrb[0].mxu0
        %727 = vmatprep.mubr.f32.mxu0 0.0
        %728 = vmatmul.mubr.f32.gmra.mrb[0].mxu0 %v510
        %v729 = vpop.f32.mrb[0].mxu0
        %v730 = vadd.f32 %v419, %v729
        %v731 = vpop.f32.mrb[0].mxu0
        %732 = vmatprep.mubr.f32.mxu0 0.0
        %733 = vmatmul.mubr.f32.gmra.mrb[0].mxu0 %v513
        %v734 = vpop.f32.mrb[0].mxu0
        %v735 = vadd.f32 %v419, %v734
        %v736 = vpop.f32.mrb[0].mxu0
        %737 = vmatprep.mubr.f32.mxu0 0.0
        %738 = vmatmul.mubr.f32.gmra.mrb[0].mxu0 %v516
        %v739 = vpop.f32.mrb[0].mxu0
        %v740 = vadd.f32 %v419, %v739
        %v741 = vpop.f32.mrb[0].mxu0
        %742 = vdwg.mxu0
        %743 = vst [vmem:[%s275] sm:$0xff] %v585
        %744 = vst [vmem:[%s275 + $0x8] sm:$0xff] %v590
        %745 = vst [vmem:[%s275 + $0x10] sm:$0xff] %v595
        %746 = vst [vmem:[%s275 + $0x18] sm:$0xff] %v600
        %747 = vst [vmem:[%s275 + $0x20] sm:$0xff] %v605
        %748 = vst [vmem:[%s275 + $0x28] sm:$0xff] %v610
        %749 = vst [vmem:[%s275 + $0x30] sm:$0xff] %v615
        %750 = vst [vmem:[%s275 + $0x38] sm:$0xff] %v620
        %751 = vst [vmem:[%s275 + $0x40] sm:$0xff] %v625
        %752 = vst [vmem:[%s275 + $0x48] sm:$0xff] %v630
        %753 = vst [vmem:[%s275 + $0x50] sm:$0xff] %v635
        %754 = vst [vmem:[%s275 + $0x58] sm:$0xff] %v640
        %755 = vst [vmem:[%s275 + $0x60] sm:$0xff] %v645
        %756 = vst [vmem:[%s275 + $0x68] sm:$0xff] %v650
        %757 = vst [vmem:[%s275 + $0x70] sm:$0xff] %v655
        %758 = vst [vmem:[%s275 + $0x78] sm:$0xff] %v660
        %759 = vst [vmem:[%s275 + $0x80] sm:$0xff] %v665
        %760 = vst [vmem:[%s275 + $0x88] sm:$0xff] %v670
        %761 = vst [vmem:[%s275 + $0x90] sm:$0xff] %v675
        %762 = vst [vmem:[%s275 + $0x98] sm:$0xff] %v680
        %763 = vst [vmem:[%s275 + $0xa0] sm:$0xff] %v685
        %764 = vst [vmem:[%s275 + $0xa8] sm:$0xff] %v690
        %765 = vst [vmem:[%s275 + $0xb0] sm:$0xff] %v695
        %766 = vst [vmem:[%s275 + $0xb8] sm:$0xff] %v700
        %767 = vst [vmem:[%s275 + $0xc0] sm:$0xff] %v705
        %768 = vst [vmem:[%s275 + $0xc8] sm:$0xff] %v710
        %769 = vst [vmem:[%s275 + $0xd0] sm:$0xff] %v715
        %770 = vst [vmem:[%s275 + $0xd8] sm:$0xff] %v720
        %771 = vst [vmem:[%s275 + $0xe0] sm:$0xff] %v725
        %772 = vst [vmem:[%s275 + $0xe8] sm:$0xff] %v730
        %773 = vst [vmem:[%s275 + $0xf0] sm:$0xff] %v735
        %774 = vst [vmem:[%s275 + $0xf8] sm:$0xff] %v740
        %s775 = sand.u32 %s168, 1
        %s776 = scalar_lea.sflag [#allocation3], %s775
        %s777 = sand.u32 %s168, 1
        %s778 = smul.addr %s777, 256
        %s779 = scalar_lea.vmem [#allocation2], %s778
        // Predicated region
        $region41: #{tpu_custom_call.1} parent=39 // pred_check
          %p780 = pneg %p178
        $region42: #{tpu_custom_call.1} parent=39 // pred_check_branch
          %782 = sbr.rel (%p780) target = $region44
        $region43: #{tpu_custom_call.1} parent=39 // pred_region
          %s783 = smul.u32 32, %s24
          %s785 = ssub.s32 4096, 4096
          %786 = vsyncadd %s776, %s785
          %s787 = smul.addr %s23, 32
          %s788 = sadd.s32 %s783, %s787
          %s789 = smul.addr %s788, 128
          %s790 = scalar_lea.hbm %s5, %s789
          %s791 = sshll.u32 %s779, 4
          %s792 = int_to_ptr.vmem [resolvable:$true] %s791
          %797 = dma.vmem_to_hbm [thread:$0]  %s792, 4096, %s790, %s776, 128, 128, 8
        $region44: #{tpu_custom_call.1} parent=39 // pred_fallthru
          _
      $region40: #{tpu_custom_call.1} parent=5 // pred_fallthru
        _
      %p798 = scmp.le.s32.totalorder 2, %s14
      // Predicated region
      $region45: #{tpu_custom_call.1} parent=5 // pred_check
        %p799 = pneg %p798
      $region46: #{tpu_custom_call.1} parent=5 // pred_check_branch
        %801 = sbr.rel (%p799) target = $region48
      $region47: #{tpu_custom_call.1} parent=5 // pred_region
        %s802 = ssub.s32 %s14, 2
        // Predicated region
        $region49: #{tpu_custom_call.1} parent=47 // pred_check
          %p803 = pneg %p184
        $region50: #{tpu_custom_call.1} parent=47 // pred_check_branch
          %805 = sbr.rel (%p803) target = $region52
        $region51: #{tpu_custom_call.1} parent=47 // pred_region
          %s806 = sand.u32 %s169, 1
          %s807 = scalar_lea.sflag [#allocation3], %s806
          %s808 = sand.u32 %s169, 1
          %s809 = smul.addr %s808, 256
          %s810 = scalar_lea.vmem [#allocation2], %s809
          %811 = dma.done %s807, 4096
        $region52: #{tpu_custom_call.1} parent=47 // pred_fallthru
          _
      $region48: #{tpu_custom_call.1} parent=5 // pred_fallthru
        _
    $region6: #{tpu_custom_call.1} parent=1 // loop_footer
      %s18 = sadd.s32 1, %s14
    $region7: #{tpu_custom_call.1} parent=1 // loop_footer_branch
      %13 = sbr.rel target = $region3
    $region8: #{tpu_custom_call.1} parent=1 // loop_exit
      _
    %812 = vsyncpa [#allocation3], 1
    %s813 = scalar_lea.sflag [#allocation3], 1
    %814 = vsyncpa %s813, 1

</llo_original>
